<compile_context>
chip_gen: v6e
topology: v6e:2x2x1
jax: 0.10.0
libtpu: 0.0.40
codegen_flags: <defaults>
</compile_context>

<pallas_src>
import jax
import jax.numpy as jnp
from jax.experimental import pallas as pl
from jax.experimental.pallas import tpu as pltpu

TILE_ROWS = 1024     # rows per streaming block (multiple of 8)
TILE_COLS = 128      # lane width
NUM_CORES = 2        # leading "parallel" grid axis (megacore split on v7x)
_PAD_X = -1.0e4      # sentinel logit: max(x,0)=0, x*0=0, exp(-1e4)->0 => 0 loss


def _make_kernel(nb, bpc, block_rows, rows, ragged):
    """Build the kernel body with all counts baked in as Python constants."""
    rem_last = rows - (nb - 1) * block_rows   # valid rows in the last real block
    groups = block_rows // 8

    def _partial(x_ref, t_ref, mask_rows=None):
        x = x_ref[...].astype(jnp.float32)
        t = t_ref[...].astype(jnp.float32)
        # Numerically-stable BCE-with-logits (identical to PyTorch's form).
        loss = jnp.maximum(x, 0.0) - x * t + jnp.log1p(jnp.exp(-jnp.abs(x)))
        if mask_rows is not None:
            # Only emitted for a ragged last block; runs once per kernel call.
            row_idx = jax.lax.broadcasted_iota(jnp.int32, loss.shape, 0)
            loss = jnp.where(row_idx < mask_rows, loss, 0.0)
        # Fold block rows into the (8, 128) accumulator shape: plain VPU adds,
        # no cross-lane reduce on the per-step critical path.
        return jnp.sum(loss.reshape(groups, 8, TILE_COLS), axis=0)

    def kernel(x_ref, t_ref, o_ref):
        i = pl.program_id(0)            # core-split axis ("parallel")
        j = pl.program_id(1)            # streaming axis  ("arbitrary")
        jg = i * bpc + j                # global block index

        @pl.when(j == 0)
        def _():
            o_ref[...] = jnp.zeros_like(o_ref)

        if ragged:
            @pl.when(jg < nb - 1)
            def _():
                o_ref[...] += _partial(x_ref, t_ref)

            @pl.when(jg == nb - 1)
            def _():
                o_ref[...] += _partial(x_ref, t_ref, mask_rows=rem_last)
        else:
            @pl.when(jg < nb)
            def _():
                o_ref[...] += _partial(x_ref, t_ref)

    return kernel


def bce_with_logits_loss(logits, targets):
    """Mean BCE-with-logits over all elements (PyTorch default reduction)."""
    assert logits.shape == targets.shape
    n = logits.size
    assert n > 0

    # Keep native dtype; flatten only (no full-size f32 copies in HBM).
    x = logits.reshape(-1)
    t = targets.reshape(-1)

    # Pad only to a multiple of 8*128 elements so the lane-dense reshape is
    # legal; sentinel values contribute exactly zero loss. For lane-aligned
    # sizes (common NCHW case) this path is skipped entirely.
    pad = (-n) % (8 * TILE_COLS)
    if pad:
        x = jnp.pad(x, (0, pad), constant_values=_PAD_X)
        t = jnp.pad(t, (0, pad), constant_values=0)

    rows = (n + pad) // TILE_COLS            # multiple of 8
    block_rows = min(TILE_ROWS, rows)        # multiple of 8
    nb = pl.cdiv(rows, block_rows)           # number of real blocks
    ragged = (rows % block_rows) != 0        # last block partially valid?
    bpc = pl.cdiv(nb, NUM_CORES)             # blocks per core

    x = x.reshape(rows, TILE_COLS)
    t = t.reshape(rows, TILE_COLS)

    def in_map(i, j):
        # Clamp so grid points beyond the real block count re-read a valid
        # block (their compute is skipped inside the kernel).
        return (jnp.minimum(i * bpc + j, nb - 1), 0)

    partial_sums = pl.pallas_call(
        _make_kernel(nb, bpc, block_rows, rows, ragged),
        out_shape=jax.ShapeDtypeStruct((NUM_CORES * 8, TILE_COLS), jnp.float32),
        grid_spec=pltpu.PrefetchScalarGridSpec(
            num_scalar_prefetch=0,
            grid=(NUM_CORES, bpc),
            in_specs=[
                pl.BlockSpec((block_rows, TILE_COLS), in_map),
                pl.BlockSpec((block_rows, TILE_COLS), in_map),
            ],
            # Per-core (8,128) lane-dense partial-sum slab, VMEM-resident
            # across the "arbitrary" axis (accumulator pattern).
            out_specs=pl.BlockSpec((8, TILE_COLS), lambda i, j: (i, 0)),
        ),
        compiler_params=pltpu.CompilerParams(
            dimension_semantics=("parallel", "arbitrary"),
        ),
    )(x, t)

    # Final tiny reduce (2*8*128 f32) + mean in plain JAX.
    return jnp.sum(partial_sums) / jnp.float32(n)


if __name__ == "__main__":
    key = jax.random.PRNGKey(0)
    k1, k2, k3, k4 = jax.random.split(key, 4)

    def ref_loss(x, t):
        xf = x.astype(jnp.float32)
        tf = t.astype(jnp.float32)
        return jnp.mean(jnp.maximum(xf, 0.0) - xf * tf
                        + jnp.log1p(jnp.exp(-jnp.abs(xf))))

    # Case 1: f32 NCHW logits/targets (typical use of the module).
    shape = (2, 4, 16, 16)
    logits = jax.random.normal(k1, shape, dtype=jnp.float32)
    targets = jax.random.bernoulli(k2, p=0.5, shape=shape).astype(jnp.float32)
    loss = jax.block_until_ready(bce_with_logits_loss(logits, targets))
    assert jnp.allclose(loss, ref_loss(logits, targets), rtol=1e-4, atol=1e-6), (
        loss, ref_loss(logits, targets))

    # Case 2: bf16 inputs with a size that is not block-aligned -> exercises
    # native-dtype streaming, sentinel padding and the ragged last-block mask
    # on both cores of the parallel axis.
    shape2 = (2, 3, 197, 128)
    logits2 = jax.random.normal(k3, shape2, dtype=jnp.bfloat16)
    targets2 = jax.random.bernoulli(k4, p=0.5, shape=shape2).astype(jnp.bfloat16)
    loss2 = jax.block_until_ready(bce_with_logits_loss(logits2, targets2))
    assert jnp.allclose(loss2, ref_loss(logits2, targets2), rtol=1e-4, atol=1e-6), (
        loss2, ref_loss(logits2, targets2))

    print("KERNEL_OK")
</pallas_src>

<mosaic_0001>
module attributes {stable_mosaic.version = 11 : i64} {
  func.func @kernel(%arg0: i32, %arg1: i32, %arg2: memref<16x128xf32, #tpu.memory_space<vmem>>, %arg3: memref<16x128xf32, #tpu.memory_space<vmem>>, %arg4: memref<8x128xf32, #tpu.memory_space<vmem>>) attributes {dimension_semantics = [#tpu.dimension_semantics<parallel>, #tpu.dimension_semantics<arbitrary>], iteration_bounds = array<i64: 2, 1>, scalar_prefetch = 0 : i64, scratch_operands = 0 : i64, tpu.core_type = #tpu.core_type<tc>, window_params = [{transform_indices = @transform_0, window_bounds = array<i64: 16, 128>}, {transform_indices = @transform_1, window_bounds = array<i64: 16, 128>}, {transform_indices = @transform_2, window_bounds = array<i64: 8, 128>}]} {
    %c1_i32 = arith.constant 1 : i32
    %0 = arith.muli %arg0, %c1_i32 : i32
    %1 = arith.addi %0, %arg1 : i32
    %c0_i32 = arith.constant 0 : i32
    %2 = arith.cmpi eq, %arg1, %c0_i32 : i32
    %3 = arith.extui %2 : i1 to i32
    %c0_i32_0 = arith.constant 0 : i32
    %4 = arith.cmpi ne, %3, %c0_i32_0 : i32
    scf.if %4 {
      %cst = arith.constant 0.000000e+00 : f32
      %8 = vector.broadcast %cst : f32 to vector<8x128xf32>
      %c0 = arith.constant 0 : index
      %c0_3 = arith.constant 0 : index
      %9 = vector.load %arg4[%c0, %c0_3] : memref<8x128xf32, #tpu.memory_space<vmem>>, vector<8x128xf32>
      tpu.vector_store %arg4[%c0, %c0_3], %8 {strides = array<i32>} : memref<8x128xf32, #tpu.memory_space<vmem>>, vector<8x128xf32>,
    } else {
    }
    %c1_i32_1 = arith.constant 1 : i32
    %5 = arith.cmpi slt, %1, %c1_i32_1 : i32
    %6 = arith.extui %5 : i1 to i32
    %c0_i32_2 = arith.constant 0 : i32
    %7 = arith.cmpi ne, %6, %c0_i32_2 : i32
    scf.if %7 {
      %c0 = arith.constant 0 : index
      %c0_3 = arith.constant 0 : index
      %8 = vector.load %arg4[%c0, %c0_3] : memref<8x128xf32, #tpu.memory_space<vmem>>, vector<8x128xf32>
      %c0_4 = arith.constant 0 : index
      %c0_5 = arith.constant 0 : index
      %9 = vector.load %arg2[%c0_4, %c0_5] : memref<16x128xf32, #tpu.memory_space<vmem>>, vector<16x128xf32>
      %c0_6 = arith.constant 0 : index
      %c0_7 = arith.constant 0 : index
      %10 = vector.load %arg3[%c0_6, %c0_7] : memref<16x128xf32, #tpu.memory_space<vmem>>, vector<16x128xf32>
      %cst = arith.constant 0.000000e+00 : f32
      %11 = vector.broadcast %cst : f32 to vector<16x128xf32>
      %12 = arith.maximumf %9, %11 : vector<16x128xf32>
      %13 = arith.mulf %9, %10 : vector<16x128xf32>
      %14 = arith.subf %12, %13 : vector<16x128xf32>
      %15 = math.absf %9 : vector<16x128xf32>
      %cst_8 = arith.constant 0.000000e+00 : f32
      %16 = vector.broadcast %cst_8 : f32 to vector<16x128xf32>
      %17 = arith.subf %16, %15 : vector<16x128xf32>
      %18 = math.exp %17 : vector<16x128xf32>
      %19 = math.log1p %18 : vector<16x128xf32>
      %20 = arith.addf %14, %19 : vector<16x128xf32>
      %21 = vector.shape_cast %20 : vector<16x128xf32> to vector<2x8x128xf32>
      %cst_9 = arith.constant dense<0.000000e+00> : vector<8x128xf32>
      %22 = vector.multi_reduction <add>, %21, %cst_9 [0] : vector<2x8x128xf32> to vector<8x128xf32>
      %23 = arith.addf %8, %22 : vector<8x128xf32>
      %c0_10 = arith.constant 0 : index
      %c0_11 = arith.constant 0 : index
      %24 = vector.load %arg4[%c0_10, %c0_11] : memref<8x128xf32, #tpu.memory_space<vmem>>, vector<8x128xf32>
      tpu.vector_store %arg4[%c0_10, %c0_11], %23 {strides = array<i32>} : memref<8x128xf32, #tpu.memory_space<vmem>>, vector<8x128xf32>,
    } else {
    }
    return
  }
  func.func @transform_0(%arg0: i32, %arg1: i32) -> (i32, i32) {
    %c1_i32 = arith.constant 1 : i32
    %0 = arith.muli %arg0, %c1_i32 : i32
    %1 = arith.addi %0, %arg1 : i32
    %c0_i32 = arith.constant 0 : i32
    %2 = arith.minsi %1, %c0_i32 : i32
    %c0_i32_0 = arith.constant 0 : i32
    %c0_i32_1 = arith.constant 0 : i32
    return %2, %c0_i32_0 : i32, i32
  }
  func.func @transform_1(%arg0: i32, %arg1: i32) -> (i32, i32) {
    %c1_i32 = arith.constant 1 : i32
    %0 = arith.muli %arg0, %c1_i32 : i32
    %1 = arith.addi %0, %arg1 : i32
    %c0_i32 = arith.constant 0 : i32
    %2 = arith.minsi %1, %c0_i32 : i32
    %c0_i32_0 = arith.constant 0 : i32
    %c0_i32_1 = arith.constant 0 : i32
    return %2, %c0_i32_0 : i32, i32
  }
  func.func @transform_2(%arg0: i32, %arg1: i32) -> (i32, i32) {
    %c0_i32 = arith.constant 0 : i32
    %c0_i32_0 = arith.constant 0 : i32
    return %arg0, %c0_i32 : i32, i32
  }
}

</mosaic_0001>

<llo_original>
// kernel: tpu_custom_call.1
$region0: #{tpu_custom_call.1}
  #allocation0 [shape = 'u32[]', space=smem, size = 0x4, offset = 0x4, fixed_abs, tag = 'smem constant byte address 0x4 - core index']
  #allocation1 [shape = 'u32[144,128]{1,0:T(1,128)}', space=vmem, size = 0x12000, scoped, tag = 'internal scratch']
  %s0 = inlined_call_operand.hbm [shape: f32[16,128], index: 0, kind: input, shape index: {}]
  %s1 = inlined_call_operand.hbm [shape: f32[16,128], index: 1, kind: input, shape index: {}]
  %s2 = inlined_call_operand.hbm [shape: f32[16,128], index: 2, kind: output, shape index: {}]
  %s3 = sld [smem:[#allocation0]]
  $region57: #{tpu_custom_call.1} parent=0
    _
  %s5 = ssub.s32 1, %s3
  %s6 = scalar_select 0, %s5, %s3
  $region1: #{tpu_custom_call.1} parent=0
    #allocation2 [shape = 'u8[16384]{0}', space=vmem, size = 0x4000, scoped, tag = 'input window, operand 0']
    #allocation3 [shape = 's32[2]{0}', space=sflag, size = 0x8, scoped, tag = 'scoped memory for tpu_custom_call.1']
    #allocation4 [shape = 's32[2]{0}', space=sflag, size = 0x8, scoped, tag = 'scoped memory for tpu_custom_call.1']
    #allocation5 [shape = 'u8[16384]{0}', space=vmem, size = 0x4000, scoped, tag = 'input window, operand 1']
    #allocation6 [shape = 's32[2]{0}', space=sflag, size = 0x8, scoped, tag = 'scoped memory for tpu_custom_call.1']
    #allocation7 [shape = 'u8[8192]{0}', space=vmem, size = 0x2000, scoped, tag = 'output window, operand 0']
    %7 = vsyncpa [#allocation3], 0
    %s8 = scalar_lea.sflag [#allocation3], 1
    %9 = vsyncpa %s8, 0
    %10 = vsyncpa [#allocation6], 0
    %s11 = scalar_lea.sflag [#allocation6], 1
    %12 = vsyncpa %s11, 0
    %13 = vsyncpa [#allocation4], 0
    %s14 = scalar_lea.sflag [#allocation4], 1
    %15 = vsyncpa %s14, 0
    loop: start=0, step=1, limit=4
    $region2: #{tpu_custom_call.1} parent=1 // loop_pre_header
      _
    $region3: #{tpu_custom_call.1} parent=1 // loop_header
      %s17 = sphi 0, %s21
      %p18 = scmp.ge.s32.totalorder %s17, 4
      %s24 = sphi 0, %s36
      %s25 = sphi 0, %s32
      %s26 = sphi 0, %s24
      %s27 = sphi 0, %s25
      %s28 = sphi 0, %s26
      %s29 = sphi 0, %s27
      %s45 = sphi 0, %s47
      %s48 = sphi 0, %s45
      %s49 = sphi 0, %s48
      %s65 = sphi 0, %s49
      %s77 = sphi 0, %s79
      %s80 = sphi 0, %s77
      %s81 = sphi 0, %s80
      %s97 = sphi 0, %s81
      %s103 = sphi 0, %s105
      %s106 = sphi 0, %s103
      %s107 = sphi 0, %s106
      %s123 = sphi 0, %s107
    $region4: #{tpu_custom_call.1} parent=1 // loop_header_branch
      %20 = sbr.rel (%p18) target = $region8
    $region5: #{tpu_custom_call.1} parent=1 // loop_body
      %s22 = ssub.s32 %s17, 1
      %s23 = ssub.s32 %s17, 2
      %s30 = sadd.s32 1, %s25
      %p31 = scmp.ge.s32.totalorder %s30, 1
      %s32 = scalar_select %p31, 0, %s30
      %s33 = sadd.s32 1, %s24
      %s34 = scalar_select %p31, %s33, %s24
      %p35 = scmp.ge.s32.totalorder %s34, 2
      %s36 = scalar_select %p35, 0, %s34
      %s37 = sadd.s32 %s24, %s25
      %p38 = scmp.lt.s32.totalorder %s37, 0
      %s39 = scalar_select %p38, %s37, 0
      %s40 = sadd.s32 %s36, %s32
      %p41 = scmp.lt.s32.totalorder %s40, 0
      %s42 = scalar_select %p41, %s40, 0
      %s43 = ssub.s32 %s39, %s42
      %p44 = scmp.eq.s32.totalorder %s43, 0
      %s46 = sadd.s32 %s45, 1
      %s47 = scalar_select %p44, %s45, %s46
      %p50 = pneg %p44
      %p51 = scmp.eq.s32.totalorder %s17, 1
      %p52 = por %p50, %p51
      %p53 = scmp.ne.s32.totalorder %s45, %s48
      %p54 = scmp.eq.s32.totalorder %s17, 0
      %p55 = por %p53, %p54
      %p56 = scmp.ne.s32.totalorder %s45, %s48
      %p57 = scmp.eq.s32.totalorder %s22, 1
      %p58 = por %p56, %p57
      %p59 = scmp.ne.s32.totalorder %s48, %s49
      %p60 = scmp.eq.s32.totalorder %s22, 0
      %p61 = por %p59, %p60
      %p62 = scmp.ne.s32.totalorder %s48, %s49
      %p63 = scmp.eq.s32.totalorder %s23, 1
      %p64 = por %p62, %p63
      %p66 = scmp.ne.s32.totalorder %s49, %s65
      %p67 = scmp.eq.s32.totalorder %s23, 0
      %p68 = por %p66, %p67
      %s69 = sadd.s32 %s24, %s25
      %p70 = scmp.lt.s32.totalorder %s69, 0
      %s71 = scalar_select %p70, %s69, 0
      %s72 = sadd.s32 %s36, %s32
      %p73 = scmp.lt.s32.totalorder %s72, 0
      %s74 = scalar_select %p73, %s72, 0
      %s75 = ssub.s32 %s71, %s74
      %p76 = scmp.eq.s32.totalorder %s75, 0
      %s78 = sadd.s32 %s77, 1
      %s79 = scalar_select %p76, %s77, %s78
      %p82 = pneg %p76
      %p83 = scmp.eq.s32.totalorder %s17, 1
      %p84 = por %p82, %p83
      %p85 = scmp.ne.s32.totalorder %s77, %s80
      %p86 = scmp.eq.s32.totalorder %s17, 0
      %p87 = por %p85, %p86
      %p88 = scmp.ne.s32.totalorder %s77, %s80
      %p89 = scmp.eq.s32.totalorder %s22, 1
      %p90 = por %p88, %p89
      %p91 = scmp.ne.s32.totalorder %s80, %s81
      %p92 = scmp.eq.s32.totalorder %s22, 0
      %p93 = por %p91, %p92
      %p94 = scmp.ne.s32.totalorder %s80, %s81
      %p95 = scmp.eq.s32.totalorder %s23, 1
      %p96 = por %p94, %p95
      %p98 = scmp.ne.s32.totalorder %s81, %s97
      %p99 = scmp.eq.s32.totalorder %s23, 0
      %p100 = por %p98, %p99
      %s101 = ssub.s32 %s24, %s36
      %p102 = scmp.eq.s32.totalorder %s101, 0
      %s104 = sadd.s32 %s103, 1
      %s105 = scalar_select %p102, %s103, %s104
      %p108 = pneg %p102
      %p109 = scmp.eq.s32.totalorder %s17, 1
      %p110 = por %p108, %p109
      %p111 = scmp.ne.s32.totalorder %s103, %s106
      %p112 = scmp.eq.s32.totalorder %s17, 0
      %p113 = por %p111, %p112
      %p114 = scmp.ne.s32.totalorder %s103, %s106
      %p115 = scmp.eq.s32.totalorder %s22, 1
      %p116 = por %p114, %p115
      %p117 = scmp.ne.s32.totalorder %s106, %s107
      %p118 = scmp.eq.s32.totalorder %s22, 0
      %p119 = por %p117, %p118
      %p120 = scmp.ne.s32.totalorder %s106, %s107
      %p121 = scmp.eq.s32.totalorder %s23, 1
      %p122 = por %p120, %p121
      %p124 = scmp.ne.s32.totalorder %s107, %s123
      %p125 = scmp.eq.s32.totalorder %s23, 0
      %p126 = por %p124, %p125
      %p127 = scmp.le.s32.totalorder 1, %s17
      %p128 = scmp.lt.s32.totalorder %s17, 3
      %p129 = pnand %p127, %p128
      %p130 = pneg %p129
      // Predicated region
      $region9: #{tpu_custom_call.1} parent=5 // pred_check
        _
      $region10: #{tpu_custom_call.1} parent=5 // pred_check_branch
        %132 = sbr.rel (%p129) target = $region12
      $region11: #{tpu_custom_call.1} parent=5 // pred_region
        %s133 = ssub.s32 %s17, 1
      $region12: #{tpu_custom_call.1} parent=5 // pred_fallthru
        _
      %p134 = scmp.lt.s32.totalorder %s17, 2
      // Predicated region
      $region13: #{tpu_custom_call.1} parent=5 // pred_check
        %p135 = pneg %p134
      $region14: #{tpu_custom_call.1} parent=5 // pred_check_branch
        %137 = sbr.rel (%p135) target = $region16
      $region15: #{tpu_custom_call.1} parent=5 // pred_region
        // Predicated region
        $region17: #{tpu_custom_call.1} parent=15 // pred_check
          %p138 = pneg %p55
        $region18: #{tpu_custom_call.1} parent=15 // pred_check_branch
          %140 = sbr.rel (%p138) target = $region20
        $region19: #{tpu_custom_call.1} parent=15 // pred_region
          %s141 = sand.u32 %s45, 1
          %s142 = scalar_lea.sflag [#allocation3], %s141
          %s143 = sand.u32 %s45, 1
          %s144 = smul.addr %s143, 16
          %s145 = scalar_lea.vmem [#allocation2], %s144
          %s146 = sadd.s32 %s24, %s25
          %p147 = scmp.lt.s32.totalorder %s146, 0
          %s148 = scalar_select %p147, %s146, 0
          %s149 = smul.u32 2, %s148
          %s151 = ssub.s32 256, 256
          %152 = vsyncadd %s142, %s151
          %s153 = smul.addr %s149, 128
          %s154 = scalar_lea.hbm %s0, %s153
          %s155 = sshll.u32 %s145, 4
          %s156 = int_to_ptr.vmem [resolvable:$true] %s155
          %161 = dma.hbm_to_vmem [thread:$0]  %s154, 256, %s156, %s142, 128, 128, 8
        $region20: #{tpu_custom_call.1} parent=15 // pred_fallthru
          _
        // Predicated region
        $region21: #{tpu_custom_call.1} parent=15 // pred_check
          %p162 = pneg %p87
        $region22: #{tpu_custom_call.1} parent=15 // pred_check_branch
          %164 = sbr.rel (%p162) target = $region24
        $region23: #{tpu_custom_call.1} parent=15 // pred_region
          %s165 = sand.u32 %s77, 1
          %s166 = scalar_lea.sflag [#allocation6], %s165
          %s167 = sand.u32 %s77, 1
          %s168 = smul.addr %s167, 16
          %s169 = scalar_lea.vmem [#allocation5], %s168
          %s170 = sadd.s32 %s24, %s25
          %p171 = scmp.lt.s32.totalorder %s170, 0
          %s172 = scalar_select %p171, %s170, 0
          %s173 = smul.u32 2, %s172
          %s175 = ssub.s32 256, 256
          %176 = vsyncadd %s166, %s175
          %s177 = smul.addr %s173, 128
          %s178 = scalar_lea.hbm %s1, %s177
          %s179 = sshll.u32 %s169, 4
          %s180 = int_to_ptr.vmem [resolvable:$true] %s179
          %185 = dma.hbm_to_vmem [thread:$0]  %s178, 256, %s180, %s166, 128, 128, 8
        $region24: #{tpu_custom_call.1} parent=15 // pred_fallthru
          _
      $region16: #{tpu_custom_call.1} parent=5 // pred_fallthru
        _
      %p186 = scmp.le.s32.totalorder 1, %s17
      %p187 = scmp.lt.s32.totalorder %s17, 3
      %p188 = pnand %p186, %p187
      %p189 = pneg %p188
      // Predicated region
      $region25: #{tpu_custom_call.1} parent=5 // pred_check
        _
      $region26: #{tpu_custom_call.1} parent=5 // pred_check_branch
        %191 = sbr.rel (%p188) target = $region28
      $region27: #{tpu_custom_call.1} parent=5 // pred_region
        %s192 = ssub.s32 %s17, 1
        %s193 = sand.u32 %s48, 1
        %s194 = scalar_lea.sflag [#allocation3], %s193
        %s195 = sand.u32 %s48, 1
        %s196 = smul.addr %s195, 16
        %s197 = scalar_lea.vmem [#allocation2], %s196
        // Predicated region
        $region29: #{tpu_custom_call.1} parent=27 // pred_check
          %p198 = pneg %p61
        $region30: #{tpu_custom_call.1} parent=27 // pred_check_branch
          %200 = sbr.rel (%p198) target = $region32
        $region31: #{tpu_custom_call.1} parent=27 // pred_region
          %201 = dma.done %s194, 256
        $region32: #{tpu_custom_call.1} parent=27 // pred_fallthru
          _
        %s202 = sand.u32 %s80, 1
        %s203 = scalar_lea.sflag [#allocation6], %s202
        %s204 = sand.u32 %s80, 1
        %s205 = smul.addr %s204, 16
        %s206 = scalar_lea.vmem [#allocation5], %s205
        // Predicated region
        $region33: #{tpu_custom_call.1} parent=27 // pred_check
          %p207 = pneg %p93
        $region34: #{tpu_custom_call.1} parent=27 // pred_check_branch
          %209 = sbr.rel (%p207) target = $region36
        $region35: #{tpu_custom_call.1} parent=27 // pred_region
          %210 = dma.done %s203, 256
        $region36: #{tpu_custom_call.1} parent=27 // pred_fallthru
          _
        %s211 = sand.u32 %s48, 1
        %s212 = scalar_lea.sflag [#allocation3], %s211
        %s213 = sand.u32 %s48, 1
        %s214 = smul.addr %s213, 16
        %s215 = scalar_lea.vmem [#allocation2], %s214
        %p216 = pneg %p61
        %p217 = pneg %p58
        %s218 = sand.u32 %s80, 1
        %s219 = scalar_lea.sflag [#allocation6], %s218
        %s220 = sand.u32 %s80, 1
        %s221 = smul.addr %s220, 16
        %s222 = scalar_lea.vmem [#allocation5], %s221
        %p223 = pneg %p93
        %p224 = pneg %p90
        %p225 = pneg %p119
        %p226 = pneg %p116
        %s227 = sand.u32 %s106, 1
        %s228 = scalar_lea.sflag [#allocation4], %s227
        %s229 = sand.u32 %s106, 1
        %s230 = smul.addr %s229, 8
        %s231 = scalar_lea.vmem [#allocation7], %s230
        %s232 = sadd.s32 %s26, %s27
        %p233 = scmp.lt.s32.totalorder %s232, 0
        %s234 = scalar_select %p233, %s232, 0
        %s235 = smul.u32 2, %s234
        %s236 = sadd.s32 %s26, %s27
        %p237 = scmp.lt.s32.totalorder %s236, 0
        %s238 = scalar_select %p237, %s236, 0
        %s239 = smul.u32 2, %s238
        %s240 = sadd.s32 %s26, %s27
        %p241 = scmp.eq.s32.totalorder %s27, 0
        // Predicated region
        $region37: #{tpu_custom_call.1} parent=27 // pred_check
          %p242 = pneg %p241
        $region38: #{tpu_custom_call.1} parent=27 // pred_check_branch
          %244 = sbr.rel (%p242) target = $region40
        $region39: #{tpu_custom_call.1} parent=27 // pred_region
          %245 = vst [vmem:[%s231] sm:$0xff] 0.0
        $region40: #{tpu_custom_call.1} parent=27 // pred_fallthru
          _
        %p246 = scmp.lt.s32.totalorder %s240, 1
        // Predicated region
        $region41: #{tpu_custom_call.1} parent=27 // pred_check
          %p247 = pneg %p246
        $region42: #{tpu_custom_call.1} parent=27 // pred_check_branch
          %249 = sbr.rel (%p247) target = $region44
        $region43: #{tpu_custom_call.1} parent=27 // pred_region
          %v250 = vld [vmem:[%s231] sm:$0xff]
          %v251 = vld [vmem:[%s197] sm:$0xff]
          %v252 = vld [vmem:[%s197 + $0x8] sm:$0xff]
          %v253 = vld [vmem:[%s206] sm:$0xff]
          %v254 = vld [vmem:[%s206 + $0x8] sm:$0xff]
          %v255 = vmax.f32 %v251, 0.0
          %v256 = vmax.f32 %v252, 0.0
          %v257 = vmul.f32 %v251, %v253
          %v258 = vmul.f32 %v252, %v254
          %v259 = vsub.f32 %v255, %v257
          %v260 = vsub.f32 %v256, %v258
          %v261 = vand.u32 2147483647, %v251
          %v262 = vand.u32 2147483647, %v252
          %v263 = vsub.f32 0.0, %v261
          %v264 = vsub.f32 0.0, %v262
          %v265 = vmul.f32 %v263, 1.442695
          %v266 = vpow.pop %v265
          %v267 = vmul.f32 %v264, 1.442695
          %v268 = vpow.pop %v267
          %v269 = vadd.f32 %v266, 1.0
          %v270 = vlog2.pop %v269
          %v271 = vmul.f32 %v270, 0.6931472
          %v272 = vmul.f32 -0.5, %v266
          %v273 = vadd.f32 %v272, 1.0
          %v274 = vmul.f32 %v273, %v266
          %v275 = vand.u32 2147483647, %v266
          %vm276 = vcmp.lt.f32.partialorder %v275, 0.0004427343
          %v277 = vsel %vm276, %v274, %v271
          %v278 = vadd.f32 %v268, 1.0
          %v279 = vlog2.pop %v278
          %v280 = vmul.f32 %v279, 0.6931472
          %v281 = vmul.f32 -0.5, %v268
          %v282 = vadd.f32 %v281, 1.0
          %v283 = vmul.f32 %v282, %v268
          %v284 = vand.u32 2147483647, %v268
          %vm285 = vcmp.lt.f32.partialorder %v284, 0.0004427343
          %v286 = vsel %vm285, %v283, %v280
          %v287 = vadd.f32 %v259, %v277
          %v288 = vadd.f32 %v260, %v286
          %v289 = vadd.f32 %v287, %v288
          %v290 = vadd.f32 %v250, %v289
          %291 = vst [vmem:[%s231] sm:$0xff] %v290
        $region44: #{tpu_custom_call.1} parent=27 // pred_fallthru
          _
        %s292 = sand.u32 %s106, 1
        %s293 = scalar_lea.sflag [#allocation4], %s292
        %s294 = sand.u32 %s106, 1
        %s295 = smul.addr %s294, 8
        %s296 = scalar_lea.vmem [#allocation7], %s295
        // Predicated region
        $region45: #{tpu_custom_call.1} parent=27 // pred_check
          %p297 = pneg %p116
        $region46: #{tpu_custom_call.1} parent=27 // pred_check_branch
          %299 = sbr.rel (%p297) target = $region48
        $region47: #{tpu_custom_call.1} parent=27 // pred_region
          %s301 = ssub.s32 128, 128
          %302 = vsyncadd %s293, %s301
          %s303 = smul.addr %s26, 128
          %s304 = scalar_lea.hbm %s2, %s303
          %s306 = sshll.u32 %s296, 4
          %s307 = int_to_ptr.vmem [resolvable:$true] %s306
          %309 = dma.vmem_to_hbm [thread:$0]  %s307, 128, %s304, %s293
        $region48: #{tpu_custom_call.1} parent=27 // pred_fallthru
          _
      $region28: #{tpu_custom_call.1} parent=5 // pred_fallthru
        _
      %p310 = scmp.le.s32.totalorder 2, %s17
      // Predicated region
      $region49: #{tpu_custom_call.1} parent=5 // pred_check
        %p311 = pneg %p310
      $region50: #{tpu_custom_call.1} parent=5 // pred_check_branch
        %313 = sbr.rel (%p311) target = $region52
      $region51: #{tpu_custom_call.1} parent=5 // pred_region
        %s314 = ssub.s32 %s17, 2
        // Predicated region
        $region53: #{tpu_custom_call.1} parent=51 // pred_check
          %p315 = pneg %p122
        $region54: #{tpu_custom_call.1} parent=51 // pred_check_branch
          %317 = sbr.rel (%p315) target = $region56
        $region55: #{tpu_custom_call.1} parent=51 // pred_region
          %s318 = sand.u32 %s107, 1
          %s319 = scalar_lea.sflag [#allocation4], %s318
          %s320 = sand.u32 %s107, 1
          %s321 = smul.addr %s320, 8
          %s322 = scalar_lea.vmem [#allocation7], %s321
          %323 = dma.done %s319, 128
        $region56: #{tpu_custom_call.1} parent=51 // pred_fallthru
          _
      $region52: #{tpu_custom_call.1} parent=5 // pred_fallthru
        _
    $region6: #{tpu_custom_call.1} parent=1 // loop_footer
      %s21 = sadd.s32 1, %s17
    $region7: #{tpu_custom_call.1} parent=1 // loop_footer_branch
      %16 = sbr.rel target = $region3
    $region8: #{tpu_custom_call.1} parent=1 // loop_exit
      _
    %324 = vsyncpa [#allocation3], 1
    %s325 = scalar_lea.sflag [#allocation3], 1
    %326 = vsyncpa %s325, 1
    %327 = vsyncpa [#allocation6], 1
    %s328 = scalar_lea.sflag [#allocation6], 1
    %329 = vsyncpa %s328, 1
    %330 = vsyncpa [#allocation4], 1
    %s331 = scalar_lea.sflag [#allocation4], 1
    %332 = vsyncpa %s331, 1

</llo_original>
